<compile_context>
chip_gen: v7x
topology: tpu7x:2x2x1
jax: 0.10.0
libtpu: 0.0.40
codegen_flags: <defaults>
</compile_context>

<pallas_src>
import functools

import jax
import jax.numpy as jnp
from jax.experimental import pallas as pl
from jax.experimental.pallas import tpu as pltpu


# ---------------------------------------------------------------------------
# Chip introspection (best-effort; conservative fallbacks keep v7x safe).
# ---------------------------------------------------------------------------
def _vmem_capacity_bytes():
    try:
        info = pltpu.get_tpu_info()
        for attr in ("vmem_capacity_bytes", "vmem_bytes", "vmem_capacity"):
            v = getattr(info, attr, None)
            if isinstance(v, int) and v > 0:
                return v
    except Exception:
        pass
    return 64 * 1024 * 1024  # conservative (v7x-sized) fallback


def _num_tensorcores():
    try:
        info = pltpu.get_tpu_info()
        for attr in ("num_cores", "cores_per_chip", "tensorcores_per_chip",
                     "num_tensorcores", "core_count"):
            n = getattr(info, attr, None)
            if isinstance(n, int) and n > 0:
                return n
    except Exception:
        pass
    try:
        kind = jax.devices()[0].device_kind.lower()
        if "v7" in kind or "7x" in kind:
            return 2
    except Exception:
        pass
    return 1


# ---------------------------------------------------------------------------
# Kernel
# ---------------------------------------------------------------------------
def _distill_kl_kernel(ys_ref, yt_ref, out_ref, *, inv_t, scale, tiles_per_split):
    t = pl.program_id(1)  # row tile within this split (reduction axis)

    @pl.when(t == 0)
    def _init():
        out_ref[...] = jnp.zeros_like(out_ref)

    ys = ys_ref[...].astype(jnp.float32) * inv_t
    yt = yt_ref[...].astype(jnp.float32) * inv_t

    ys_shift = ys - jnp.max(ys, axis=1, keepdims=True)
    yt_shift = yt - jnp.max(yt, axis=1, keepdims=True)

    e_s = jnp.exp(ys_shift)
    e_t = jnp.exp(yt_shift)
    z_s = jnp.sum(e_s, axis=1, keepdims=True)
    z_t = jnp.sum(e_t, axis=1, keepdims=True)

    # log p_t - log p_s = (yt_shift - ys_shift) - log(z_t / z_s)   (1 log / row)
    d = (yt_shift - ys_shift) - jnp.log(z_t / z_s)

    # row KL = sum_j p_t[j]*d[j] = (1/z_t) * sum_j e_t[j]*d[j]; exact per-row divide.
    # (zero-padded rows give d == 0 identically, so they contribute exactly 0.)
    row_kl = jnp.sum(e_t * d, axis=1, keepdims=True) / z_t

    # accumulate in the VMEM-resident output block (broadcast across 128 lanes)
    out_ref[...] += jnp.sum(row_kl)

    @pl.when(t == tiles_per_split - 1)
    def _finalize():
        out_ref[...] = out_ref[...] * scale  # T^2 / B applied once per split


# ---------------------------------------------------------------------------
# Tiling heuristics
# ---------------------------------------------------------------------------
def _choose_tile_rows(batch, classes, in_itemsize, vmem_budget, max_rows=None):
    """Largest dtype-pack-aligned row tile whose working set fits the budget."""
    pack = max(8, 32 // max(in_itemsize, 1))  # f32 -> 8, bf16 -> 16, int8/fp8 -> 32
    # 2 inputs x 2 pipeline buffers of the input dtype + ~6 live f32 temps per row
    per_row = classes * (4 * in_itemsize + 6 * 4)
    tb = max(pack, (vmem_budget // max(per_row, 1)) // pack * pack)
    if max_rows is not None:
        tb = min(tb, max(pack, (max_rows // pack) * pack))
    b_ceil = pl.cdiv(batch, pack) * pack
    return min(tb, b_ceil)


# ---------------------------------------------------------------------------
# Wrapper
# ---------------------------------------------------------------------------
def distill_kl(y_s, y_t, temperature, *, max_rows_per_tile=None,
               core_parallel_split=False):
    """Pallas implementation of DistillKL.forward. Returns a scalar f32 loss."""
    assert y_s.shape == y_t.shape and y_s.ndim == 2
    B, C = y_s.shape
    T = float(temperature)
    itemsize = jnp.dtype(y_s.dtype).itemsize

    # Chip-aware VMEM sizing: ~48 MiB limit on 64 MiB parts (v7x),
    # up to 96 MiB on 128 MiB parts (v5e/v6e).
    vmem_limit = min(96 * 1024 * 1024, (_vmem_capacity_bytes() * 3) // 4)
    tile_budget = vmem_limit // 3

    tb = _choose_tile_rows(B, C, itemsize, tile_budget, max_rows_per_tile)
    n_tiles = pl.cdiv(B, tb)

    # 2-way batch split only when there are actually 2 TensorCores to feed
    # (v7x) and enough tiles for each split to do real work.
    num_splits = 2 if (_num_tensorcores() >= 2 and n_tiles >= 4) else 1
    tiles_per_split = pl.cdiv(n_tiles, num_splits)
    b_pad = num_splits * tiles_per_split * tb

    if b_pad != B:  # zero-pad partial tiles; padded rows contribute exactly 0
        pad = b_pad - B
        y_s = jnp.pad(y_s, ((0, pad), (0, 0)))
        y_t = jnp.pad(y_t, ((0, pad), (0, 0)))

    kernel = functools.partial(
        _distill_kl_kernel,
        inv_t=1.0 / T,
        scale=(T * T) / float(B),
        tiles_per_split=tiles_per_split,
    )

    in_block = pl.BlockSpec((tb, C), lambda p, t: (p * tiles_per_split + t, 0))

    if core_parallel_split and num_splits > 1:
        # Force per-TC sharding of the split axis (validate with bundle/xprof).
        split_sem = pltpu.CORE_PARALLEL
    else:
        split_sem = "parallel"

    partials = pl.pallas_call(
        kernel,
        out_shape=jax.ShapeDtypeStruct((1, 128 * num_splits), jnp.float32),
        grid=(num_splits, tiles_per_split),
        in_specs=[in_block, in_block],
        out_specs=pl.BlockSpec((1, 128), lambda p, t: (0, p)),
        compiler_params=pltpu.CompilerParams(
            dimension_semantics=(split_sem, "arbitrary"),
            vmem_limit_bytes=int(vmem_limit),
        ),
        cost_estimate=pl.CostEstimate(
            flops=int(12 * b_pad * C),
            transcendentals=int(2 * b_pad * C),
            bytes_accessed=int(y_s.nbytes) + int(y_t.nbytes) + 4 * 128 * num_splits,
        ),
    )(y_s, y_t)

    # each split broadcast its scalar partial across its lane-dense 128 block
    return jnp.sum(partials.reshape(num_splits, 128)[:, 0])


# ---------------------------------------------------------------------------
# Pure-JAX reference
# ---------------------------------------------------------------------------
def _distill_kl_ref(y_s, y_t, temperature):
    T = temperature
    log_p_s = jax.nn.log_softmax(y_s.astype(jnp.float32) / T, axis=1)
    p_t = jax.nn.softmax(y_t.astype(jnp.float32) / T, axis=1)
    kl = jnp.sum(p_t * (jnp.log(p_t) - log_p_s))
    return kl * (T * T) / y_s.shape[0]


if __name__ == "__main__":
    key = jax.random.PRNGKey(0)
    k1, k2, k3, k4 = jax.random.split(key, 4)

    T = 4.0

    # Case 1: small logits batch (8 samples, 32 classes), float32, single tile.
    B, C = 8, 32
    y_s = jax.random.normal(k1, (B, C), dtype=jnp.float32)
    y_t = jax.random.normal(k2, (B, C), dtype=jnp.float32)
    loss = distill_kl(y_s, y_t, T)
    jax.block_until_ready(loss)
    ref = _distill_kl_ref(y_s, y_t, T)
    assert jnp.allclose(loss, ref, rtol=2e-3, atol=1e-5), (loss, ref)

    # Case 2: multi-tile grid, bf16 inputs (16-row sublane pack) and a
    # zero-padded partial tile (B not a multiple of the row tile).
    B2, C2 = 52, 160
    y_s2 = jax.random.normal(k3, (B2, C2), dtype=jnp.bfloat16)
    y_t2 = jax.random.normal(k4, (B2, C2), dtype=jnp.bfloat16)
    loss2 = distill_kl(y_s2, y_t2, T, max_rows_per_tile=16)
    jax.block_until_ready(loss2)
    ref2 = _distill_kl_ref(y_s2, y_t2, T)
    assert jnp.allclose(loss2, ref2, rtol=2e-3, atol=1e-5), (loss2, ref2)

    print("KERNEL_OK")
</pallas_src>

<mosaic_0001>
module attributes {stable_mosaic.version = 11 : i64} {
  func.func @_distill_kl_kernel(%arg0: i32, %arg1: i32, %arg2: memref<8x32xf32, #tpu.memory_space<vmem>>, %arg3: memref<8x32xf32, #tpu.memory_space<vmem>>, %arg4: memref<1x128xf32, #tpu.memory_space<vmem>>) attributes {dimension_semantics = [#tpu.dimension_semantics<parallel>, #tpu.dimension_semantics<arbitrary>], iteration_bounds = array<i64: 1, 1>, scalar_prefetch = 0 : i64, scratch_operands = 0 : i64, tpu.core_type = #tpu.core_type<tc>, window_params = [{transform_indices = @transform_0, window_bounds = array<i64: 8, 32>}, {transform_indices = @transform_1, window_bounds = array<i64: 8, 32>}, {transform_indices = @transform_2, window_bounds = array<i64: 1, 128>}]} {
    %c0_i32 = arith.constant 0 : i32
    %0 = arith.cmpi eq, %arg1, %c0_i32 : i32
    %1 = arith.extui %0 : i1 to i32
    %c0_i32_0 = arith.constant 0 : i32
    %2 = arith.cmpi ne, %1, %c0_i32_0 : i32
    scf.if %2 {
      %cst_17 = arith.constant 0.000000e+00 : f32
      %43 = vector.broadcast %cst_17 : f32 to vector<1x128xf32>
      %c0_18 = arith.constant 0 : index
      %c0_19 = arith.constant 0 : index
      %44 = vector.load %arg4[%c0_18, %c0_19] : memref<1x128xf32, #tpu.memory_space<vmem>>, vector<1x128xf32>
      tpu.vector_store %arg4[%c0_18, %c0_19], %43 {strides = array<i32>} : memref<1x128xf32, #tpu.memory_space<vmem>>, vector<1x128xf32>,
    } else {
    }
    %c0 = arith.constant 0 : index
    %c0_1 = arith.constant 0 : index
    %3 = vector.load %arg2[%c0, %c0_1] : memref<8x32xf32, #tpu.memory_space<vmem>>, vector<8x32xf32>
    %cst = arith.constant 2.500000e-01 : f32
    %4 = vector.broadcast %cst : f32 to vector<8x32xf32>
    %5 = arith.mulf %3, %4 : vector<8x32xf32>
    %c0_2 = arith.constant 0 : index
    %c0_3 = arith.constant 0 : index
    %6 = vector.load %arg3[%c0_2, %c0_3] : memref<8x32xf32, #tpu.memory_space<vmem>>, vector<8x32xf32>
    %cst_4 = arith.constant 2.500000e-01 : f32
    %7 = vector.broadcast %cst_4 : f32 to vector<8x32xf32>
    %8 = arith.mulf %6, %7 : vector<8x32xf32>
    %cst_5 = arith.constant dense<0xFF800000> : vector<8xf32>
    %9 = vector.multi_reduction <maximumf>, %5, %cst_5 [1] : vector<8x32xf32> to vector<8xf32>
    %10 = vector.shape_cast %9 : vector<8xf32> to vector<8x1xf32>
    %11 = vector.broadcast %10 : vector<8x1xf32> to vector<8x32xf32>
    %12 = arith.subf %5, %11 : vector<8x32xf32>
    %cst_6 = arith.constant dense<0xFF800000> : vector<8xf32>
    %13 = vector.multi_reduction <maximumf>, %8, %cst_6 [1] : vector<8x32xf32> to vector<8xf32>
    %14 = vector.shape_cast %13 : vector<8xf32> to vector<8x1xf32>
    %15 = vector.broadcast %14 : vector<8x1xf32> to vector<8x32xf32>
    %16 = arith.subf %8, %15 : vector<8x32xf32>
    %17 = math.exp %12 : vector<8x32xf32>
    %18 = math.exp %16 : vector<8x32xf32>
    %cst_7 = arith.constant dense<0.000000e+00> : vector<8xf32>
    %19 = vector.multi_reduction <add>, %17, %cst_7 [1] : vector<8x32xf32> to vector<8xf32>
    %20 = vector.shape_cast %19 : vector<8xf32> to vector<8x1xf32>
    %cst_8 = arith.constant dense<0.000000e+00> : vector<8xf32>
    %21 = vector.multi_reduction <add>, %18, %cst_8 [1] : vector<8x32xf32> to vector<8xf32>
    %22 = vector.shape_cast %21 : vector<8xf32> to vector<8x1xf32>
    %23 = arith.subf %16, %12 : vector<8x32xf32>
    %24 = arith.divf %22, %20 : vector<8x1xf32>
    %25 = math.log %24 : vector<8x1xf32>
    %26 = vector.broadcast %25 : vector<8x1xf32> to vector<8x32xf32>
    %27 = arith.subf %23, %26 : vector<8x32xf32>
    %28 = arith.mulf %18, %27 : vector<8x32xf32>
    %cst_9 = arith.constant dense<0.000000e+00> : vector<8xf32>
    %29 = vector.multi_reduction <add>, %28, %cst_9 [1] : vector<8x32xf32> to vector<8xf32>
    %30 = vector.shape_cast %29 : vector<8xf32> to vector<8x1xf32>
    %31 = arith.divf %30, %22 : vector<8x1xf32>
    %c0_10 = arith.constant 0 : index
    %c0_11 = arith.constant 0 : index
    %32 = vector.load %arg4[%c0_10, %c0_11] : memref<1x128xf32, #tpu.memory_space<vmem>>, vector<1x128xf32>
    %33 = vector.shape_cast %31 : vector<8x1xf32> to vector<1x8x1xf32>
    %cst_12 = arith.constant dense<0.000000e+00> : vector<1xf32>
    %34 = vector.multi_reduction <add>, %33, %cst_12 [1, 2] : vector<1x8x1xf32> to vector<1xf32>
    %35 = vector.shape_cast %34 : vector<1xf32> to vector<1x1x1xf32>
    %36 = vector.extract %35[0, 0, 0] : f32 from vector<1x1x1xf32>
    %37 = vector.broadcast %36 : f32 to vector<1x128xf32>
    %38 = arith.addf %32, %37 : vector<1x128xf32>
    %c0_13 = arith.constant 0 : index
    %c0_14 = arith.constant 0 : index
    %39 = vector.load %arg4[%c0_13, %c0_14] : memref<1x128xf32, #tpu.memory_space<vmem>>, vector<1x128xf32>
    tpu.vector_store %arg4[%c0_13, %c0_14], %38 {strides = array<i32>} : memref<1x128xf32, #tpu.memory_space<vmem>>, vector<1x128xf32>,
    %c0_i32_15 = arith.constant 0 : i32
    %40 = arith.cmpi eq, %arg1, %c0_i32_15 : i32
    %41 = arith.extui %40 : i1 to i32
    %c0_i32_16 = arith.constant 0 : i32
    %42 = arith.cmpi ne, %41, %c0_i32_16 : i32
    scf.if %42 {
      %c0_17 = arith.constant 0 : index
      %c0_18 = arith.constant 0 : index
      %43 = vector.load %arg4[%c0_17, %c0_18] : memref<1x128xf32, #tpu.memory_space<vmem>>, vector<1x128xf32>
      %cst_19 = arith.constant 2.000000e+00 : f32
      %44 = vector.broadcast %cst_19 : f32 to vector<1x128xf32>
      %45 = arith.mulf %43, %44 : vector<1x128xf32>
      %c0_20 = arith.constant 0 : index
      %c0_21 = arith.constant 0 : index
      %46 = vector.load %arg4[%c0_20, %c0_21] : memref<1x128xf32, #tpu.memory_space<vmem>>, vector<1x128xf32>
      tpu.vector_store %arg4[%c0_20, %c0_21], %45 {strides = array<i32>} : memref<1x128xf32, #tpu.memory_space<vmem>>, vector<1x128xf32>,
    } else {
    }
    return
  }
  func.func @transform_0(%arg0: i32, %arg1: i32) -> (i32, i32) {
    %c1_i32 = arith.constant 1 : i32
    %0 = arith.muli %arg0, %c1_i32 : i32
    %1 = arith.addi %0, %arg1 : i32
    %c0_i32 = arith.constant 0 : i32
    %c0_i32_0 = arith.constant 0 : i32
    return %1, %c0_i32 : i32, i32
  }
  func.func @transform_1(%arg0: i32, %arg1: i32) -> (i32, i32) {
    %c1_i32 = arith.constant 1 : i32
    %0 = arith.muli %arg0, %c1_i32 : i32
    %1 = arith.addi %0, %arg1 : i32
    %c0_i32 = arith.constant 0 : i32
    %c0_i32_0 = arith.constant 0 : i32
    return %1, %c0_i32 : i32, i32
  }
  func.func @transform_2(%arg0: i32, %arg1: i32) -> (i32, i32) {
    %c0_i32 = arith.constant 0 : i32
    %c0_i32_0 = arith.constant 0 : i32
    return %c0_i32, %arg0 : i32, i32
  }
}

</mosaic_0001>

<llo_original>
// kernel: tpu_custom_call.1
$region0: #{tpu_custom_call.1}
  #allocation0 [shape = 'u32[]', space=smem, size = 0x4, offset = 0x4, fixed_abs, tag = 'smem constant byte address 0x4 - core index']
  #allocation1 [shape = 'u32[144,128]{1,0:T(1,128)}', space=vmem, size = 0x12000, scoped, tag = 'internal scratch']
  %s0 = inlined_call_operand.hbm [shape: f32[8,32], index: 0, kind: input, shape index: {}]
  %s1 = inlined_call_operand.hbm [shape: f32[8,32], index: 1, kind: input, shape index: {}]
  %s2 = inlined_call_operand.hbm [shape: f32[1,128], index: 2, kind: output, shape index: {}]
  %s3 = sld [smem:[#allocation0]]
  $region34: #{tpu_custom_call.1} parent=0
    _
  %s5 = ssub.s32 1, %s3
  %s6 = scalar_select 0, %s5, %s3
  $region1: #{tpu_custom_call.1} parent=0
    #allocation2 [shape = 'u8[4096]{0}', space=vmem, size = 0x1000, scoped, tag = 'input window, operand 0, single buffered']
    #allocation3 [shape = 's32[1]{0}', space=sflag, size = 0x4, scoped, tag = 'scoped memory for tpu_custom_call.1']
    #allocation4 [shape = 's32[1]{0}', space=sflag, size = 0x4, scoped, tag = 'scoped memory for tpu_custom_call.1']
    #allocation5 [shape = 'u8[4096]{0}', space=vmem, size = 0x1000, scoped, tag = 'input window, operand 1, single buffered']
    #allocation6 [shape = 's32[1]{0}', space=sflag, size = 0x4, scoped, tag = 'scoped memory for tpu_custom_call.1']
    #allocation7 [shape = 'u8[512]{0}', space=vmem, size = 0x400, scoped, tag = 'output window, operand 0, single buffered']
    %7 = vsyncpa [#allocation3], 0
    %8 = vsyncpa [#allocation6], 0
    %9 = vsyncpa [#allocation4], 0
    // Predicated region
    $region2: #{tpu_custom_call.1} parent=1 // pred_check
      _
    $region3: #{tpu_custom_call.1} parent=1 // pred_check_branch
      %11 = sbr.rel (0) target = $region5
    $region4: #{tpu_custom_call.1} parent=1 // pred_region
      %s12 = sadd.s32 0, 0
      %s14 = ssub.s32 128, 128
      %15 = vsyncadd [#allocation3], %s14
      %s16 = smul.addr %s12, 128
      %s17 = scalar_lea.hbm %s0, %s16
      %s19 = sshll.u32 [#allocation2], 4
      %s20 = int_to_ptr.vmem [resolvable:$true] %s19
      %22 = dma.hbm_to_vmem [thread:$0]  %s17, 128, %s20, [#allocation3]
    $region5: #{tpu_custom_call.1} parent=1 // pred_fallthru
      _
    // Predicated region
    $region6: #{tpu_custom_call.1} parent=1 // pred_check
      _
    $region7: #{tpu_custom_call.1} parent=1 // pred_check_branch
      %24 = sbr.rel (0) target = $region9
    $region8: #{tpu_custom_call.1} parent=1 // pred_region
      %s25 = sadd.s32 0, 0
      %s27 = ssub.s32 128, 128
      %28 = vsyncadd [#allocation6], %s27
      %s29 = smul.addr %s25, 128
      %s30 = scalar_lea.hbm %s1, %s29
      %s32 = sshll.u32 [#allocation5], 4
      %s33 = int_to_ptr.vmem [resolvable:$true] %s32
      %35 = dma.hbm_to_vmem [thread:$0]  %s30, 128, %s33, [#allocation6]
    $region9: #{tpu_custom_call.1} parent=1 // pred_fallthru
      _
    // Predicated region
    $region10: #{tpu_custom_call.1} parent=1 // pred_check
      _
    $region11: #{tpu_custom_call.1} parent=1 // pred_check_branch
      %37 = sbr.rel (0) target = $region13
    $region12: #{tpu_custom_call.1} parent=1 // pred_region
      %38 = dma.done [#allocation3], 128
    $region13: #{tpu_custom_call.1} parent=1 // pred_fallthru
      _
    // Predicated region
    $region14: #{tpu_custom_call.1} parent=1 // pred_check
      _
    $region15: #{tpu_custom_call.1} parent=1 // pred_check_branch
      %40 = sbr.rel (0) target = $region17
    $region16: #{tpu_custom_call.1} parent=1 // pred_region
      %41 = dma.done [#allocation6], 128
    $region17: #{tpu_custom_call.1} parent=1 // pred_fallthru
      _
    %s42 = sadd.s32 0, 0
    %s43 = sadd.s32 0, 0
    %p44 = scmp.eq.s32.totalorder 0, 0
    // Predicated region
    $region18: #{tpu_custom_call.1} parent=1 // pred_check
      %p45 = pneg %p44
    $region19: #{tpu_custom_call.1} parent=1 // pred_check_branch
      %47 = sbr.rel (%p45) target = $region21
    $region20: #{tpu_custom_call.1} parent=1 // pred_region
      %48 = vst [vmem:[#allocation7] sm:$0x1] 0.0
    $region21: #{tpu_custom_call.1} parent=1 // pred_fallthru
      _
    %v49 = vld [vmem:[#allocation2] sm:$0xff]
    %v50 = vmul.f32 %v49, 0.25
    %v51 = vld [vmem:[#allocation5] sm:$0xff]
    %v52 = vmul.f32 %v51, 0.25
    %vm53 = vcmask 261120
    %v54 = vsel %vm53, %v50, -inf
    %55 = vmax.xlane.f32.xlu0 %v54
    %v56 = vpop.xlane.xlu0 %55
    %v57 = vsub.f32 %v50, %v56
    %v58 = vsel %vm53, %v52, -inf
    %59 = vmax.xlane.f32.xlu0 %v58
    %v60 = vpop.xlane.xlu0 %59
    %v61 = vsub.f32 %v52, %v60
    %v62 = vmul.f32 %v57, 1.442695
    %v63 = vpow.pop %v62
    %v64 = vmul.f32 %v61, 1.442695
    %v65 = vpow.pop %v64
    %v66 = vsel %vm53, %v63, 0.0
    %67 = vadd.xlane.f32.xlu0 %v66
    %v68 = vpop.xlane.xlu0 %67
    %v69 = vsel %vm53, %v65, 0.0
    %70 = vadd.xlane.f32.xlu0 %v69
    %v71 = vpop.xlane.xlu0 %70
    %v72 = vsub.f32 %v61, %v57
    %v73 = vrcp.pop %v68
    %v74 = vmul.f32 %v71, %v73
    %v75 = vlog2.pop %v74
    %v76 = vmul.f32 %v75, 0.6931472
    %v77 = vsub.f32 %v72, %v76
    %v78 = vmul.f32 %v65, %v77
    %v79 = vsel %vm53, %v78, 0.0
    %80 = vadd.xlane.f32.xlu0 %v79
    %v81 = vpop.xlane.xlu0 %80
    %v82 = vrcp.pop %v71
    %v83 = vmul.f32 %v81, %v82
    %v84 = vld [vmem:[#allocation7] sm:$0x1]
    %vm85 = vcmask 7168
    %v86 = vsel %vm85, %v83, 0.0
    %87 = vadd.xlane.f32.xlu0 %v86
    %v88 = vpop.xlane.xlu0 %87
    %v89 = vrot.slane %v88, 4
    %v90 = vadd.f32 %v88, %v89
    %v91 = vrot.slane %v90, 2
    %v92 = vadd.f32 %v90, %v91
    %v93 = vrot.slane %v92, 1
    %v94 = vadd.f32 %v92, %v93
    %s95 = vtos %v94
    %v96 = vstv %s95
    %v97 = vadd.f32 %v84, %v96
    %98 = vst [vmem:[#allocation7] sm:$0x1] %v97
    // Predicated region
    $region22: #{tpu_custom_call.1} parent=1 // pred_check
      %p99 = pneg %p44
    $region23: #{tpu_custom_call.1} parent=1 // pred_check_branch
      %101 = sbr.rel (%p99) target = $region25
    $region24: #{tpu_custom_call.1} parent=1 // pred_region
      %v102 = vld [vmem:[#allocation7] sm:$0x1]
      %v103 = vmul.f32 %v102, 2.0
      %104 = vst [vmem:[#allocation7] sm:$0x1] %v103
    $region25: #{tpu_custom_call.1} parent=1 // pred_fallthru
      _
    // Predicated region
    $region26: #{tpu_custom_call.1} parent=1 // pred_check
      _
    $region27: #{tpu_custom_call.1} parent=1 // pred_check_branch
      %106 = sbr.rel (0) target = $region29
    $region28: #{tpu_custom_call.1} parent=1 // pred_region
      %s108 = ssub.s32 16, 16
      %109 = vsyncadd [#allocation4], %s108
      %s111 = sshll.u32 [#allocation7], 4
      %s112 = int_to_ptr.vmem [resolvable:$true] %s111
      %114 = dma.vmem_to_hbm [thread:$0]  %s112, 16, %s2, [#allocation4]
    $region29: #{tpu_custom_call.1} parent=1 // pred_fallthru
      _
    // Predicated region
    $region30: #{tpu_custom_call.1} parent=1 // pred_check
      _
    $region31: #{tpu_custom_call.1} parent=1 // pred_check_branch
      %116 = sbr.rel (0) target = $region33
    $region32: #{tpu_custom_call.1} parent=1 // pred_region
      %117 = dma.done [#allocation4], 16
    $region33: #{tpu_custom_call.1} parent=1 // pred_fallthru
      _
    %118 = vsyncpa [#allocation3], 1
    %119 = vsyncpa [#allocation6], 1
    %120 = vsyncpa [#allocation4], 1

</llo_original>
